<compile_context>
chip_gen: v7x
topology: tpu7x:2x2x1
jax: 0.10.0
libtpu: 0.0.40
codegen_flags: <defaults>
</compile_context>

<pallas_src>
import jax
import jax.numpy as jnp
from jax.experimental import pallas as pl
from jax.experimental.pallas import tpu as pltpu


def _round_up(a, b):
    return ((a + b - 1) // b) * b


def _tanh_fast(z, approx):
    """tanh(z) = 1 - 2/(exp(2z)+1): 1 EUP exp + 1 (approx) reciprocal + VPU ops.

    Overflow-safe: exp->inf gives tanh->1, exp->0 gives tanh->-1.
    """
    e2z = jnp.exp(2.0 * z)
    if approx:
        return 1.0 - 2.0 * pl.reciprocal(e2z + 1.0, approx=True)
    return 1.0 - 2.0 / (e2z + 1.0)


def make_pinn_kernel(n_layers, approx_recip, compute_dtype):
    """Full MLP forward for one batch tile, (features, batch) layout.

    Ref order from pallas_call:
        xy_ref, w0x_ref, w0y_ref, b0_ref,
        w1_ref, b1_ref, ..., w{L-2}_ref, b{L-2}_ref,   # hidden HxH layers
        wL_ref, bL_ref,                                 # output layer (H,1),(1,1)
        out_ref
    """
    n_mid = n_layers - 2

    def kernel(xy_ref, w0x_ref, w0y_ref, b0_ref, *refs):
        out_ref = refs[-1]
        params = refs[:-1]

        x = xy_ref[0:1, :]                                # (1, tile_m)
        y = xy_ref[1:2, :]                                # (1, tile_m)
        # TODO(synk): a stride-0 sublane-broadcast load (xy_ref[pl.ds(0,H,stride=0),:])
        # would fuse the (1,tile)->(H,tile) broadcast into the load; kept as the
        # implicit VPU broadcast here for portability.

        # Layer 0 (2 -> H): two VPU broadcast-FMAs, no padded MXU matmul.
        h = w0x_ref[...] * x + w0y_ref[...] * y + b0_ref[...]   # (H, tile_m) f32
        h = _tanh_fast(h.astype(compute_dtype), approx_recip)

        # Hidden layers (H -> H) on the MXU; batch stays on the lane axis.
        # Unrolled Python loop -> full LLO scheduling visibility.
        for i in range(n_mid):
            w = params[2 * i][...].astype(compute_dtype)          # (H, H)
            b = params[2 * i + 1][...]                            # (H, 1) f32
            z = jnp.dot(w, h, preferred_element_type=jnp.float32) + b
            h = _tanh_fast(z.astype(compute_dtype), approx_recip)

        # Output layer (H -> 1): VPU multiply + XLU sublane reduction instead of
        # an M=1 MXU matmul (removes the last matmul push/pop per tile).
        wL = params[2 * n_mid][...]                               # (H, 1)
        bL = params[2 * n_mid + 1][...]                           # (1, 1)
        u = jnp.sum(wL * h.astype(jnp.float32), axis=0, keepdims=True) + bL
        out_ref[...] = u.astype(out_ref.dtype)                    # (1, tile_m)

    return kernel


def pinn_forward(x, y, weights, biases, *, tile_m=8192, approx_recip=True,
                 compute_dtype=jnp.float32):
    """Pallas forward matching PINN.forward(x, y).

    weights[i] has torch.nn.Linear layout (out_features, in_features);
    biases[i] is (out_features,).  x, y are (N, 1).  Returns (N, 1).

    compute_dtype=jnp.bfloat16 is the optional v6e/v7x EUP/MXU fast path
    (f32 accumulation is kept); leave f32 on v5e or when tight accuracy is
    required.
    """
    n_layers = len(weights)
    assert n_layers >= 2 and len(biases) == n_layers
    H = weights[0].shape[0]
    assert weights[0].shape == (H, 2)
    assert weights[-1].shape[0] == 1
    # Keep full sublane density on all generations.
    assert H % 8 == 0, "n_neurons must be a multiple of 8 for sublane density"

    n = x.shape[0]
    n128 = _round_up(n, 128)
    # Batch sits on the lane axis -> tile must be a multiple of 128.
    tile_m = max(128, _round_up(min(tile_m, n128), 128))
    # Keep >= 2 grid steps when there is enough work (v7x megacore sharding).
    if n128 // tile_m < 2 and n128 >= 256:
        tile_m = _round_up((n128 + 1) // 2, 128)
    n_pad = _round_up(n, tile_m)

    # Single stacked (2, n_pad) input: row 0 = x, row 1 = y.
    xy = jnp.concatenate([x.reshape(1, -1), y.reshape(1, -1)], axis=0)
    xy = jnp.pad(xy.astype(jnp.float32), ((0, 0), (0, n_pad - n)))

    # First layer: split the (H, 2) weight into two (H, 1) columns host-side.
    w0 = weights[0].astype(jnp.float32)
    params = [w0[:, 0:1], w0[:, 1:2],
              biases[0].reshape(-1, 1).astype(jnp.float32)]
    in_specs = [
        pl.BlockSpec((2, tile_m), lambda i: (0, i)),     # stacked x/y rows
        pl.BlockSpec((H, 1), lambda i: (0, 0)),          # w0x
        pl.BlockSpec((H, 1), lambda i: (0, 0)),          # w0y
        pl.BlockSpec((H, 1), lambda i: (0, 0)),          # b0
    ]
    # Hidden layers keep torch (out, in) layout for W @ h on the MXU.
    for w, b in zip(weights[1:-1], biases[1:-1]):
        w = w.astype(jnp.float32)                        # (H, H)
        b_col = b.reshape(-1, 1).astype(jnp.float32)     # (H, 1)
        params += [w, b_col]
        in_specs += [pl.BlockSpec(w.shape, lambda i: (0, 0)),
                     pl.BlockSpec(b_col.shape, lambda i: (0, 0))]
    # Output layer as an (H, 1) column for the VPU/XLU reduction.
    wL = weights[-1].astype(jnp.float32).reshape(-1, 1)  # (H, 1)
    bL = biases[-1].reshape(1, 1).astype(jnp.float32)    # (1, 1)
    params += [wL, bL]
    in_specs += [pl.BlockSpec(wL.shape, lambda i: (0, 0)),
                 pl.BlockSpec(bL.shape, lambda i: (0, 0))]

    out = pl.pallas_call(
        make_pinn_kernel(n_layers, approx_recip, compute_dtype),
        out_shape=jax.ShapeDtypeStruct((1, n_pad), jnp.float32),
        grid=(n_pad // tile_m,),
        in_specs=in_specs,
        out_specs=pl.BlockSpec((1, tile_m), lambda i: (0, i)),
        compiler_params=pltpu.CompilerParams(
            dimension_semantics=("parallel",)),
    )(xy, *params)

    return out[0, :n].reshape(n, 1)                      # (N, 1)


def init_pinn_params(key, n_layers, n_neurons):
    """Xavier-uniform weights (torch layout: (out, in)), zero biases."""
    dims = [2] + [n_neurons] * (n_layers - 1) + [1]
    weights, biases = [], []
    for i in range(n_layers):
        fan_in, fan_out = dims[i], dims[i + 1]
        key, sub = jax.random.split(key)
        bound = (6.0 / (fan_in + fan_out)) ** 0.5
        w = jax.random.uniform(
            sub, (fan_out, fan_in), jnp.float32, minval=-bound, maxval=bound)
        weights.append(w)
        biases.append(jnp.zeros((fan_out,), jnp.float32))
    return weights, biases


def pinn_forward_ref(x, y, weights, biases):
    """Pure-JAX reference identical to the PyTorch forward."""
    h = jnp.concatenate([x, y], axis=-1).astype(jnp.float32)
    for i, (w, b) in enumerate(zip(weights, biases)):
        h = h @ w.T + b
        if i < len(weights) - 1:
            h = jnp.tanh(h)
    return h


if __name__ == "__main__":
    n_layers = 4       # Linear layers: 2 -> 32 -> 32 -> 32 -> 1
    n_neurons = 32

    key = jax.random.PRNGKey(0)
    kx, ky, kp = jax.random.split(key, 3)
    weights, biases = init_pinn_params(kp, n_layers, n_neurons)

    # Two batch sizes: one small (single-vs-split tile clamp) and one odd-sized
    # (exercises padding + multi-tile grid).
    for batch in (200, 1037):
        x = jax.random.normal(jax.random.fold_in(kx, batch), (batch, 1), jnp.float32)
        y = jax.random.normal(jax.random.fold_in(ky, batch), (batch, 1), jnp.float32)
        u_ref = pinn_forward_ref(x, y, weights, biases)

        # Exact-tanh path (plain divide): matches the PyTorch forward tightly.
        u = jax.block_until_ready(
            pinn_forward(x, y, weights, biases, approx_recip=False))
        assert u.shape == (batch, 1)
        assert jnp.allclose(u, u_ref, atol=1e-5, rtol=1e-5), "exact-path mismatch"

        # Fast path (EUP approx reciprocal inside tanh) — production default.
        u_fast = jax.block_until_ready(
            pinn_forward(x, y, weights, biases, approx_recip=True))
        assert jnp.allclose(u_fast, u_ref, atol=1e-2, rtol=1e-2), "fast-path mismatch"

    print("KERNEL_OK")
</pallas_src>

<mosaic_0001>
module attributes {stable_mosaic.version = 11 : i64} {
  func.func @kernel(%arg0: i32, %arg1: memref<2x128xf32, #tpu.memory_space<vmem>>, %arg2: memref<32x1xf32, #tpu.memory_space<vmem>>, %arg3: memref<32x1xf32, #tpu.memory_space<vmem>>, %arg4: memref<32x1xf32, #tpu.memory_space<vmem>>, %arg5: memref<32x32xf32, #tpu.memory_space<vmem>>, %arg6: memref<32x1xf32, #tpu.memory_space<vmem>>, %arg7: memref<32x32xf32, #tpu.memory_space<vmem>>, %arg8: memref<32x1xf32, #tpu.memory_space<vmem>>, %arg9: memref<32x1xf32, #tpu.memory_space<vmem>>, %arg10: memref<1x1xf32, #tpu.memory_space<vmem>>, %arg11: memref<1x128xf32, #tpu.memory_space<vmem>>) attributes {dimension_semantics = [#tpu.dimension_semantics<parallel>], iteration_bounds = array<i64: 2>, scalar_prefetch = 0 : i64, scratch_operands = 0 : i64, tpu.core_type = #tpu.core_type<tc>, window_params = [{transform_indices = @transform_0, window_bounds = array<i64: 2, 128>}, {pipeline_mode = #tpu.pipeline_mode<synchronous>, transform_indices = @transform_1, window_bounds = array<i64: 32, 1>}, {pipeline_mode = #tpu.pipeline_mode<synchronous>, transform_indices = @transform_2, window_bounds = array<i64: 32, 1>}, {pipeline_mode = #tpu.pipeline_mode<synchronous>, transform_indices = @transform_3, window_bounds = array<i64: 32, 1>}, {pipeline_mode = #tpu.pipeline_mode<synchronous>, transform_indices = @transform_4, window_bounds = array<i64: 32, 32>}, {pipeline_mode = #tpu.pipeline_mode<synchronous>, transform_indices = @transform_5, window_bounds = array<i64: 32, 1>}, {pipeline_mode = #tpu.pipeline_mode<synchronous>, transform_indices = @transform_6, window_bounds = array<i64: 32, 32>}, {pipeline_mode = #tpu.pipeline_mode<synchronous>, transform_indices = @transform_7, window_bounds = array<i64: 32, 1>}, {pipeline_mode = #tpu.pipeline_mode<synchronous>, transform_indices = @transform_8, window_bounds = array<i64: 32, 1>}, {pipeline_mode = #tpu.pipeline_mode<synchronous>, transform_indices = @transform_9, window_bounds = array<i64: 1, 1>}, {transform_indices = @transform_10, window_bounds = array<i64: 1, 128>}]} {
    %c0 = arith.constant 0 : index
    %c0_0 = arith.constant 0 : index
    %0 = vector.load %arg1[%c0, %c0_0] : memref<2x128xf32, #tpu.memory_space<vmem>>, vector<1x128xf32>
    %c1 = arith.constant 1 : index
    %c0_1 = arith.constant 0 : index
    %1 = vector.load %arg1[%c1, %c0_1] : memref<2x128xf32, #tpu.memory_space<vmem>>, vector<1x128xf32>
    %c0_2 = arith.constant 0 : index
    %c0_3 = arith.constant 0 : index
    %2 = vector.load %arg2[%c0_2, %c0_3] : memref<32x1xf32, #tpu.memory_space<vmem>>, vector<32x1xf32>
    %3 = vector.broadcast %2 : vector<32x1xf32> to vector<32x128xf32>
    %4 = vector.broadcast %0 : vector<1x128xf32> to vector<32x128xf32>
    %5 = arith.mulf %3, %4 : vector<32x128xf32>
    %c0_4 = arith.constant 0 : index
    %c0_5 = arith.constant 0 : index
    %6 = vector.load %arg3[%c0_4, %c0_5] : memref<32x1xf32, #tpu.memory_space<vmem>>, vector<32x1xf32>
    %7 = vector.broadcast %6 : vector<32x1xf32> to vector<32x128xf32>
    %8 = vector.broadcast %1 : vector<1x128xf32> to vector<32x128xf32>
    %9 = arith.mulf %7, %8 : vector<32x128xf32>
    %10 = arith.addf %5, %9 : vector<32x128xf32>
    %c0_6 = arith.constant 0 : index
    %c0_7 = arith.constant 0 : index
    %11 = vector.load %arg4[%c0_6, %c0_7] : memref<32x1xf32, #tpu.memory_space<vmem>>, vector<32x1xf32>
    %12 = vector.broadcast %11 : vector<32x1xf32> to vector<32x128xf32>
    %13 = arith.addf %10, %12 : vector<32x128xf32>
    %cst = arith.constant 2.000000e+00 : f32
    %14 = vector.broadcast %cst : f32 to vector<32x128xf32>
    %15 = arith.mulf %14, %13 : vector<32x128xf32>
    %16 = math.exp %15 : vector<32x128xf32>
    %cst_8 = arith.constant 1.000000e+00 : f32
    %17 = vector.broadcast %cst_8 : f32 to vector<32x128xf32>
    %18 = arith.addf %16, %17 : vector<32x128xf32>
    %cst_9 = arith.constant 2.000000e+00 : f32
    %19 = vector.broadcast %cst_9 : f32 to vector<32x128xf32>
    %20 = arith.divf %19, %18 : vector<32x128xf32>
    %cst_10 = arith.constant 1.000000e+00 : f32
    %21 = vector.broadcast %cst_10 : f32 to vector<32x128xf32>
    %22 = arith.subf %21, %20 : vector<32x128xf32>
    %c0_11 = arith.constant 0 : index
    %c0_12 = arith.constant 0 : index
    %23 = vector.load %arg5[%c0_11, %c0_12] : memref<32x32xf32, #tpu.memory_space<vmem>>, vector<32x32xf32>
    %c0_13 = arith.constant 0 : index
    %c0_14 = arith.constant 0 : index
    %24 = vector.load %arg6[%c0_13, %c0_14] : memref<32x1xf32, #tpu.memory_space<vmem>>, vector<32x1xf32>
    %cst_15 = arith.constant dense<0.000000e+00> : vector<32x128xf32>
    %25 = tpu.matmul %23, %22, %cst_15 {dimension_numbers = #tpu.dot_dimension_numbers<[1], [0], [0], [1], [0, 0, 1, 1], [], []>} : vector<32x32xf32>, vector<32x128xf32>, vector<32x128xf32> -> vector<32x128xf32>
    %26 = vector.broadcast %24 : vector<32x1xf32> to vector<32x128xf32>
    %27 = arith.addf %25, %26 : vector<32x128xf32>
    %cst_16 = arith.constant 2.000000e+00 : f32
    %28 = vector.broadcast %cst_16 : f32 to vector<32x128xf32>
    %29 = arith.mulf %28, %27 : vector<32x128xf32>
    %30 = math.exp %29 : vector<32x128xf32>
    %cst_17 = arith.constant 1.000000e+00 : f32
    %31 = vector.broadcast %cst_17 : f32 to vector<32x128xf32>
    %32 = arith.addf %30, %31 : vector<32x128xf32>
    %cst_18 = arith.constant 2.000000e+00 : f32
    %33 = vector.broadcast %cst_18 : f32 to vector<32x128xf32>
    %34 = arith.divf %33, %32 : vector<32x128xf32>
    %cst_19 = arith.constant 1.000000e+00 : f32
    %35 = vector.broadcast %cst_19 : f32 to vector<32x128xf32>
    %36 = arith.subf %35, %34 : vector<32x128xf32>
    %c0_20 = arith.constant 0 : index
    %c0_21 = arith.constant 0 : index
    %37 = vector.load %arg7[%c0_20, %c0_21] : memref<32x32xf32, #tpu.memory_space<vmem>>, vector<32x32xf32>
    %c0_22 = arith.constant 0 : index
    %c0_23 = arith.constant 0 : index
    %38 = vector.load %arg8[%c0_22, %c0_23] : memref<32x1xf32, #tpu.memory_space<vmem>>, vector<32x1xf32>
    %cst_24 = arith.constant dense<0.000000e+00> : vector<32x128xf32>
    %39 = tpu.matmul %37, %36, %cst_24 {dimension_numbers = #tpu.dot_dimension_numbers<[1], [0], [0], [1], [0, 0, 1, 1], [], []>} : vector<32x32xf32>, vector<32x128xf32>, vector<32x128xf32> -> vector<32x128xf32>
    %40 = vector.broadcast %38 : vector<32x1xf32> to vector<32x128xf32>
    %41 = arith.addf %39, %40 : vector<32x128xf32>
    %cst_25 = arith.constant 2.000000e+00 : f32
    %42 = vector.broadcast %cst_25 : f32 to vector<32x128xf32>
    %43 = arith.mulf %42, %41 : vector<32x128xf32>
    %44 = math.exp %43 : vector<32x128xf32>
    %cst_26 = arith.constant 1.000000e+00 : f32
    %45 = vector.broadcast %cst_26 : f32 to vector<32x128xf32>
    %46 = arith.addf %44, %45 : vector<32x128xf32>
    %cst_27 = arith.constant 2.000000e+00 : f32
    %47 = vector.broadcast %cst_27 : f32 to vector<32x128xf32>
    %48 = arith.divf %47, %46 : vector<32x128xf32>
    %cst_28 = arith.constant 1.000000e+00 : f32
    %49 = vector.broadcast %cst_28 : f32 to vector<32x128xf32>
    %50 = arith.subf %49, %48 : vector<32x128xf32>
    %c0_29 = arith.constant 0 : index
    %c0_30 = arith.constant 0 : index
    %51 = vector.load %arg9[%c0_29, %c0_30] : memref<32x1xf32, #tpu.memory_space<vmem>>, vector<32x1xf32>
    %c0_31 = arith.constant 0 : index
    %c0_32 = arith.constant 0 : index
    %52 = vector.load %arg10[%c0_31, %c0_32] : memref<1x1xf32, #tpu.memory_space<vmem>>, vector<1x1xf32>
    %53 = vector.broadcast %51 : vector<32x1xf32> to vector<32x128xf32>
    %54 = arith.mulf %53, %50 : vector<32x128xf32>
    %cst_33 = arith.constant dense<0.000000e+00> : vector<128xf32>
    %55 = vector.multi_reduction <add>, %54, %cst_33 [0] : vector<32x128xf32> to vector<128xf32>
    %56 = vector.shape_cast %55 : vector<128xf32> to vector<1x128xf32>
    %57 = vector.broadcast %52 : vector<1x1xf32> to vector<1x128xf32>
    %58 = arith.addf %56, %57 : vector<1x128xf32>
    %c0_34 = arith.constant 0 : index
    %c0_35 = arith.constant 0 : index
    %59 = vector.load %arg11[%c0_34, %c0_35] : memref<1x128xf32, #tpu.memory_space<vmem>>, vector<1x128xf32>
    tpu.vector_store %arg11[%c0_34, %c0_35], %58 {strides = array<i32>} : memref<1x128xf32, #tpu.memory_space<vmem>>, vector<1x128xf32>,
    return
  }
  func.func @transform_0(%arg0: i32) -> (i32, i32) {
    %c0_i32 = arith.constant 0 : i32
    %c0_i32_0 = arith.constant 0 : i32
    return %c0_i32, %arg0 : i32, i32
  }
  func.func @transform_1(%arg0: i32) -> (i32, i32) {
    %c0_i32 = arith.constant 0 : i32
    %c0_i32_0 = arith.constant 0 : i32
    %c0_i32_1 = arith.constant 0 : i32
    return %c0_i32, %c0_i32_0 : i32, i32
  }
  func.func @transform_2(%arg0: i32) -> (i32, i32) {
    %c0_i32 = arith.constant 0 : i32
    %c0_i32_0 = arith.constant 0 : i32
    %c0_i32_1 = arith.constant 0 : i32
    return %c0_i32, %c0_i32_0 : i32, i32
  }
  func.func @transform_3(%arg0: i32) -> (i32, i32) {
    %c0_i32 = arith.constant 0 : i32
    %c0_i32_0 = arith.constant 0 : i32
    %c0_i32_1 = arith.constant 0 : i32
    return %c0_i32, %c0_i32_0 : i32, i32
  }
  func.func @transform_4(%arg0: i32) -> (i32, i32) {
    %c0_i32 = arith.constant 0 : i32
    %c0_i32_0 = arith.constant 0 : i32
    %c0_i32_1 = arith.constant 0 : i32
    return %c0_i32, %c0_i32_0 : i32, i32
  }
  func.func @transform_5(%arg0: i32) -> (i32, i32) {
    %c0_i32 = arith.constant 0 : i32
    %c0_i32_0 = arith.constant 0 : i32
    %c0_i32_1 = arith.constant 0 : i32
    return %c0_i32, %c0_i32_0 : i32, i32
  }
  func.func @transform_6(%arg0: i32) -> (i32, i32) {
    %c0_i32 = arith.constant 0 : i32
    %c0_i32_0 = arith.constant 0 : i32
    %c0_i32_1 = arith.constant 0 : i32
    return %c0_i32, %c0_i32_0 : i32, i32
  }
  func.func @transform_7(%arg0: i32) -> (i32, i32) {
    %c0_i32 = arith.constant 0 : i32
    %c0_i32_0 = arith.constant 0 : i32
    %c0_i32_1 = arith.constant 0 : i32
    return %c0_i32, %c0_i32_0 : i32, i32
  }
  func.func @transform_8(%arg0: i32) -> (i32, i32) {
    %c0_i32 = arith.constant 0 : i32
    %c0_i32_0 = arith.constant 0 : i32
    %c0_i32_1 = arith.constant 0 : i32
    return %c0_i32, %c0_i32_0 : i32, i32
  }
  func.func @transform_9(%arg0: i32) -> (i32, i32) {
    %c0_i32 = arith.constant 0 : i32
    %c0_i32_0 = arith.constant 0 : i32
    %c0_i32_1 = arith.constant 0 : i32
    return %c0_i32, %c0_i32_0 : i32, i32
  }
  func.func @transform_10(%arg0: i32) -> (i32, i32) {
    %c0_i32 = arith.constant 0 : i32
    %c0_i32_0 = arith.constant 0 : i32
    return %c0_i32, %arg0 : i32, i32
  }
}

</mosaic_0001>

<llo_original>
// kernel: tpu_custom_call.1
$region0: #{tpu_custom_call.1}
  #allocation0 [shape = 'u32[]', space=smem, size = 0x4, offset = 0x4, fixed_abs, tag = 'smem constant byte address 0x4 - core index']
  #allocation1 [shape = 'u32[144,128]{1,0:T(1,128)}', space=vmem, size = 0x12000, scoped, tag = 'internal scratch']
  #allocation2 [shape = 'f32[1,1]{1,0:T(1,128)S(1)}', space=vmem, size = 0x200, scoped, tag = 'scoped memory for tpu_custom_call.1']
  %s0 = inlined_call_operand.vmem [shape: f32[2,256], index: 0, kind: input, shape index: {}]
  %s1 = inlined_call_operand.vmem [shape: f32[32,1], index: 1, kind: input, shape index: {}]
  %s2 = inlined_call_operand.vmem [shape: f32[32,1], index: 2, kind: input, shape index: {}]
  %s3 = inlined_call_operand.vmem [shape: f32[32,1], index: 3, kind: input, shape index: {}]
  %s4 = inlined_call_operand.vmem [shape: f32[32,32], index: 4, kind: input, shape index: {}]
  %s5 = inlined_call_operand.vmem [shape: f32[32,1], index: 5, kind: input, shape index: {}]
  %s6 = inlined_call_operand.vmem [shape: f32[32,32], index: 6, kind: input, shape index: {}]
  %s7 = inlined_call_operand.vmem [shape: f32[32,1], index: 7, kind: input, shape index: {}]
  %s8 = inlined_call_operand.vmem [shape: f32[32,1], index: 8, kind: input, shape index: {}]
  %s9 = inlined_call_operand.<no memory space> [shape: f32[1,1], index: 9, kind: input, shape index: {}]
  %s10 = inlined_call_operand.hbm [shape: f32[1,256], index: 10, kind: output, shape index: {}]
  %s11 = sld [smem:[#allocation0]]
  $region73: #{tpu_custom_call.1} parent=0
    _
  %s13 = ssub.s32 1, %s11
  %s14 = scalar_select 0, %s13, %s11
  %v15 = vstv %s9
  %16 = vst [vmem:[#allocation2] sm:$0x1] %v15
  $region1: #{tpu_custom_call.1} parent=0
    #allocation3 [shape = 'u8[1024]{0}', space=vmem, size = 0x400, scoped, tag = 'output window, operand 0']
    #allocation4 [shape = 's32[2]{0}', space=sflag, size = 0x8, scoped, tag = 'scoped memory for tpu_custom_call.1']
    %17 = vsyncpa [#allocation4], 0
    %s18 = scalar_lea.sflag [#allocation4], 1
    %19 = vsyncpa %s18, 0
    loop: start=0, step=1, limit=4
    $region2: #{tpu_custom_call.1} parent=1 // loop_pre_header
      _
    $region3: #{tpu_custom_call.1} parent=1 // loop_header
      %s21 = sphi 0, %s25
      %p22 = scmp.ge.s32.totalorder %s21, 4
      %s31 = sphi 0, %s33
      %s34 = sphi 0, %s31
      %s35 = sphi 0, %s34
      %s51 = sphi 0, %s35
      %s55 = sphi 0, %s55
      %s57 = sphi 0, %s55
      %s58 = sphi 0, %s57
      %s72 = sphi 0, %s58
      %s76 = sphi 0, %s76
      %s78 = sphi 0, %s76
      %s79 = sphi 0, %s78
      %s93 = sphi 0, %s79
      %s97 = sphi 0, %s97
      %s99 = sphi 0, %s97
      %s100 = sphi 0, %s99
      %s114 = sphi 0, %s100
      %s118 = sphi 0, %s118
      %s120 = sphi 0, %s118
      %s121 = sphi 0, %s120
      %s135 = sphi 0, %s121
      %s139 = sphi 0, %s139
      %s141 = sphi 0, %s139
      %s142 = sphi 0, %s141
      %s156 = sphi 0, %s142
      %s160 = sphi 0, %s160
      %s162 = sphi 0, %s160
      %s163 = sphi 0, %s162
      %s177 = sphi 0, %s163
      %s181 = sphi 0, %s181
      %s183 = sphi 0, %s181
      %s184 = sphi 0, %s183
      %s198 = sphi 0, %s184
      %s202 = sphi 0, %s202
      %s204 = sphi 0, %s202
      %s205 = sphi 0, %s204
      %s219 = sphi 0, %s205
      %s223 = sphi 0, %s223
      %s225 = sphi 0, %s223
      %s226 = sphi 0, %s225
      %s240 = sphi 0, %s226
      %s246 = sphi 0, %s248
      %s249 = sphi 0, %s246
      %s250 = sphi 0, %s249
      %s266 = sphi 0, %s250
    $region4: #{tpu_custom_call.1} parent=1 // loop_header_branch
      %24 = sbr.rel (%p22) target = $region8
    $region5: #{tpu_custom_call.1} parent=1 // loop_body
      %s26 = ssub.s32 %s21, 1
      %s27 = ssub.s32 %s21, 2
      %s28 = sadd.s32 %s21, 1
      %s29 = ssub.s32 %s21, %s28
      %p30 = scmp.eq.s32.totalorder %s29, 0
      %s32 = sadd.s32 %s31, 1
      %s33 = scalar_select %p30, %s31, %s32
      %p36 = pneg %p30
      %p37 = scmp.eq.s32.totalorder %s21, 1
      %p38 = por %p36, %p37
      %p39 = scmp.ne.s32.totalorder %s31, %s34
      %p40 = scmp.eq.s32.totalorder %s21, 0
      %p41 = por %p39, %p40
      %p42 = scmp.ne.s32.totalorder %s31, %s34
      %p43 = scmp.eq.s32.totalorder %s26, 1
      %p44 = por %p42, %p43
      %p45 = scmp.ne.s32.totalorder %s34, %s35
      %p46 = scmp.eq.s32.totalorder %s26, 0
      %p47 = por %p45, %p46
      %p48 = scmp.ne.s32.totalorder %s34, %s35
      %p49 = scmp.eq.s32.totalorder %s27, 1
      %p50 = por %p48, %p49
      %p52 = scmp.ne.s32.totalorder %s35, %s51
      %p53 = scmp.eq.s32.totalorder %s27, 0
      %p54 = por %p52, %p53
      %s56 = sadd.s32 %s55, 1
      %p59 = scmp.eq.s32.totalorder %s21, 1
      %p60 = scmp.ne.s32.totalorder %s55, %s57
      %p61 = scmp.eq.s32.totalorder %s21, 0
      %p62 = por %p60, %p61
      %p63 = scmp.ne.s32.totalorder %s55, %s57
      %p64 = scmp.eq.s32.totalorder %s26, 1
      %p65 = por %p63, %p64
      %p66 = scmp.ne.s32.totalorder %s57, %s58
      %p67 = scmp.eq.s32.totalorder %s26, 0
      %p68 = por %p66, %p67
      %p69 = scmp.ne.s32.totalorder %s57, %s58
      %p70 = scmp.eq.s32.totalorder %s27, 1
      %p71 = por %p69, %p70
      %p73 = scmp.ne.s32.totalorder %s58, %s72
      %p74 = scmp.eq.s32.totalorder %s27, 0
      %p75 = por %p73, %p74
      %s77 = sadd.s32 %s76, 1
      %p80 = scmp.eq.s32.totalorder %s21, 1
      %p81 = scmp.ne.s32.totalorder %s76, %s78
      %p82 = scmp.eq.s32.totalorder %s21, 0
      %p83 = por %p81, %p82
      %p84 = scmp.ne.s32.totalorder %s76, %s78
      %p85 = scmp.eq.s32.totalorder %s26, 1
      %p86 = por %p84, %p85
      %p87 = scmp.ne.s32.totalorder %s78, %s79
      %p88 = scmp.eq.s32.totalorder %s26, 0
      %p89 = por %p87, %p88
      %p90 = scmp.ne.s32.totalorder %s78, %s79
      %p91 = scmp.eq.s32.totalorder %s27, 1
      %p92 = por %p90, %p91
      %p94 = scmp.ne.s32.totalorder %s79, %s93
      %p95 = scmp.eq.s32.totalorder %s27, 0
      %p96 = por %p94, %p95
      %s98 = sadd.s32 %s97, 1
      %p101 = scmp.eq.s32.totalorder %s21, 1
      %p102 = scmp.ne.s32.totalorder %s97, %s99
      %p103 = scmp.eq.s32.totalorder %s21, 0
      %p104 = por %p102, %p103
      %p105 = scmp.ne.s32.totalorder %s97, %s99
      %p106 = scmp.eq.s32.totalorder %s26, 1
      %p107 = por %p105, %p106
      %p108 = scmp.ne.s32.totalorder %s99, %s100
      %p109 = scmp.eq.s32.totalorder %s26, 0
      %p110 = por %p108, %p109
      %p111 = scmp.ne.s32.totalorder %s99, %s100
      %p112 = scmp.eq.s32.totalorder %s27, 1
      %p113 = por %p111, %p112
      %p115 = scmp.ne.s32.totalorder %s100, %s114
      %p116 = scmp.eq.s32.totalorder %s27, 0
      %p117 = por %p115, %p116
      %s119 = sadd.s32 %s118, 1
      %p122 = scmp.eq.s32.totalorder %s21, 1
      %p123 = scmp.ne.s32.totalorder %s118, %s120
      %p124 = scmp.eq.s32.totalorder %s21, 0
      %p125 = por %p123, %p124
      %p126 = scmp.ne.s32.totalorder %s118, %s120
      %p127 = scmp.eq.s32.totalorder %s26, 1
      %p128 = por %p126, %p127
      %p129 = scmp.ne.s32.totalorder %s120, %s121
      %p130 = scmp.eq.s32.totalorder %s26, 0
      %p131 = por %p129, %p130
      %p132 = scmp.ne.s32.totalorder %s120, %s121
      %p133 = scmp.eq.s32.totalorder %s27, 1
      %p134 = por %p132, %p133
      %p136 = scmp.ne.s32.totalorder %s121, %s135
      %p137 = scmp.eq.s32.totalorder %s27, 0
      %p138 = por %p136, %p137
      %s140 = sadd.s32 %s139, 1
      %p143 = scmp.eq.s32.totalorder %s21, 1
      %p144 = scmp.ne.s32.totalorder %s139, %s141
      %p145 = scmp.eq.s32.totalorder %s21, 0
      %p146 = por %p144, %p145
      %p147 = scmp.ne.s32.totalorder %s139, %s141
      %p148 = scmp.eq.s32.totalorder %s26, 1
      %p149 = por %p147, %p148
      %p150 = scmp.ne.s32.totalorder %s141, %s142
      %p151 = scmp.eq.s32.totalorder %s26, 0
      %p152 = por %p150, %p151
      %p153 = scmp.ne.s32.totalorder %s141, %s142
      %p154 = scmp.eq.s32.totalorder %s27, 1
      %p155 = por %p153, %p154
      %p157 = scmp.ne.s32.totalorder %s142, %s156
      %p158 = scmp.eq.s32.totalorder %s27, 0
      %p159 = por %p157, %p158
      %s161 = sadd.s32 %s160, 1
      %p164 = scmp.eq.s32.totalorder %s21, 1
      %p165 = scmp.ne.s32.totalorder %s160, %s162
      %p166 = scmp.eq.s32.totalorder %s21, 0
      %p167 = por %p165, %p166
      %p168 = scmp.ne.s32.totalorder %s160, %s162
      %p169 = scmp.eq.s32.totalorder %s26, 1
      %p170 = por %p168, %p169
      %p171 = scmp.ne.s32.totalorder %s162, %s163
      %p172 = scmp.eq.s32.totalorder %s26, 0
      %p173 = por %p171, %p172
      %p174 = scmp.ne.s32.totalorder %s162, %s163
      %p175 = scmp.eq.s32.totalorder %s27, 1
      %p176 = por %p174, %p175
      %p178 = scmp.ne.s32.totalorder %s163, %s177
      %p179 = scmp.eq.s32.totalorder %s27, 0
      %p180 = por %p178, %p179
      %s182 = sadd.s32 %s181, 1
      %p185 = scmp.eq.s32.totalorder %s21, 1
      %p186 = scmp.ne.s32.totalorder %s181, %s183
      %p187 = scmp.eq.s32.totalorder %s21, 0
      %p188 = por %p186, %p187
      %p189 = scmp.ne.s32.totalorder %s181, %s183
      %p190 = scmp.eq.s32.totalorder %s26, 1
      %p191 = por %p189, %p190
      %p192 = scmp.ne.s32.totalorder %s183, %s184
      %p193 = scmp.eq.s32.totalorder %s26, 0
      %p194 = por %p192, %p193
      %p195 = scmp.ne.s32.totalorder %s183, %s184
      %p196 = scmp.eq.s32.totalorder %s27, 1
      %p197 = por %p195, %p196
      %p199 = scmp.ne.s32.totalorder %s184, %s198
      %p200 = scmp.eq.s32.totalorder %s27, 0
      %p201 = por %p199, %p200
      %s203 = sadd.s32 %s202, 1
      %p206 = scmp.eq.s32.totalorder %s21, 1
      %p207 = scmp.ne.s32.totalorder %s202, %s204
      %p208 = scmp.eq.s32.totalorder %s21, 0
      %p209 = por %p207, %p208
      %p210 = scmp.ne.s32.totalorder %s202, %s204
      %p211 = scmp.eq.s32.totalorder %s26, 1
      %p212 = por %p210, %p211
      %p213 = scmp.ne.s32.totalorder %s204, %s205
      %p214 = scmp.eq.s32.totalorder %s26, 0
      %p215 = por %p213, %p214
      %p216 = scmp.ne.s32.totalorder %s204, %s205
      %p217 = scmp.eq.s32.totalorder %s27, 1
      %p218 = por %p216, %p217
      %p220 = scmp.ne.s32.totalorder %s205, %s219
      %p221 = scmp.eq.s32.totalorder %s27, 0
      %p222 = por %p220, %p221
      %s224 = sadd.s32 %s223, 1
      %p227 = scmp.eq.s32.totalorder %s21, 1
      %p228 = scmp.ne.s32.totalorder %s223, %s225
      %p229 = scmp.eq.s32.totalorder %s21, 0
      %p230 = por %p228, %p229
      %p231 = scmp.ne.s32.totalorder %s223, %s225
      %p232 = scmp.eq.s32.totalorder %s26, 1
      %p233 = por %p231, %p232
      %p234 = scmp.ne.s32.totalorder %s225, %s226
      %p235 = scmp.eq.s32.totalorder %s26, 0
      %p236 = por %p234, %p235
      %p237 = scmp.ne.s32.totalorder %s225, %s226
      %p238 = scmp.eq.s32.totalorder %s27, 1
      %p239 = por %p237, %p238
      %p241 = scmp.ne.s32.totalorder %s226, %s240
      %p242 = scmp.eq.s32.totalorder %s27, 0
      %p243 = por %p241, %p242
      %s244 = ssub.s32 %s21, %s28
      %p245 = scmp.eq.s32.totalorder %s244, 0
      %s247 = sadd.s32 %s246, 1
      %s248 = scalar_select %p245, %s246, %s247
      %p251 = pneg %p245
      %p252 = scmp.eq.s32.totalorder %s21, 1
      %p253 = por %p251, %p252
      %p254 = scmp.ne.s32.totalorder %s246, %s249
      %p255 = scmp.eq.s32.totalorder %s21, 0
      %p256 = por %p254, %p255
      %p257 = scmp.ne.s32.totalorder %s246, %s249
      %p258 = scmp.eq.s32.totalorder %s26, 1
      %p259 = por %p257, %p258
      %p260 = scmp.ne.s32.totalorder %s249, %s250
      %p261 = scmp.eq.s32.totalorder %s26, 0
      %p262 = por %p260, %p261
      %p263 = scmp.ne.s32.totalorder %s249, %s250
      %p264 = scmp.eq.s32.totalorder %s27, 1
      %p265 = por %p263, %p264
      %p267 = scmp.ne.s32.totalorder %s250, %s266
      %p268 = scmp.eq.s32.totalorder %s27, 0
      %p269 = por %p267, %p268
      %p270 = scmp.le.s32.totalorder 1, %s21
      %p271 = scmp.lt.s32.totalorder %s21, 3
      %p272 = pnand %p270, %p271
      %p273 = pneg %p272
      // Predicated region
      $region9: #{tpu_custom_call.1} parent=5 // pred_check
        _
      $region10: #{tpu_custom_call.1} parent=5 // pred_check_branch
        %275 = sbr.rel (%p272) target = $region12
      $region11: #{tpu_custom_call.1} parent=5 // pred_region
        %s276 = ssub.s32 %s21, 1
        // Predicated region
        $region13: #{tpu_custom_call.1} parent=11 // pred_check
          %p277 = pneg %p68
        $region14: #{tpu_custom_call.1} parent=11 // pred_check_branch
          %279 = sbr.rel (%p277) target = $region16
        $region15: #{tpu_custom_call.1} parent=11 // pred_region
          _
        $region16: #{tpu_custom_call.1} parent=11 // pred_fallthru
          _
        // Predicated region
        $region17: #{tpu_custom_call.1} parent=11 // pred_check
          %p280 = pneg %p89
        $region18: #{tpu_custom_call.1} parent=11 // pred_check_branch
          %282 = sbr.rel (%p280) target = $region20
        $region19: #{tpu_custom_call.1} parent=11 // pred_region
          _
        $region20: #{tpu_custom_call.1} parent=11 // pred_fallthru
          _
        // Predicated region
        $region21: #{tpu_custom_call.1} parent=11 // pred_check
          %p283 = pneg %p110
        $region22: #{tpu_custom_call.1} parent=11 // pred_check_branch
          %285 = sbr.rel (%p283) target = $region24
        $region23: #{tpu_custom_call.1} parent=11 // pred_region
          _
        $region24: #{tpu_custom_call.1} parent=11 // pred_fallthru
          _
        // Predicated region
        $region25: #{tpu_custom_call.1} parent=11 // pred_check
          %p286 = pneg %p131
        $region26: #{tpu_custom_call.1} parent=11 // pred_check_branch
          %288 = sbr.rel (%p286) target = $region28
        $region27: #{tpu_custom_call.1} parent=11 // pred_region
          _
        $region28: #{tpu_custom_call.1} parent=11 // pred_fallthru
          _
        // Predicated region
        $region29: #{tpu_custom_call.1} parent=11 // pred_check
          %p289 = pneg %p152
        $region30: #{tpu_custom_call.1} parent=11 // pred_check_branch
          %291 = sbr.rel (%p289) target = $region32
        $region31: #{tpu_custom_call.1} parent=11 // pred_region
          _
        $region32: #{tpu_custom_call.1} parent=11 // pred_fallthru
          _
        // Predicated region
        $region33: #{tpu_custom_call.1} parent=11 // pred_check
          %p292 = pneg %p173
        $region34: #{tpu_custom_call.1} parent=11 // pred_check_branch
          %294 = sbr.rel (%p292) target = $region36
        $region35: #{tpu_custom_call.1} parent=11 // pred_region
          _
        $region36: #{tpu_custom_call.1} parent=11 // pred_fallthru
          _
        // Predicated region
        $region37: #{tpu_custom_call.1} parent=11 // pred_check
          %p295 = pneg %p194
        $region38: #{tpu_custom_call.1} parent=11 // pred_check_branch
          %297 = sbr.rel (%p295) target = $region40
        $region39: #{tpu_custom_call.1} parent=11 // pred_region
          _
        $region40: #{tpu_custom_call.1} parent=11 // pred_fallthru
          _
        // Predicated region
        $region41: #{tpu_custom_call.1} parent=11 // pred_check
          %p298 = pneg %p215
        $region42: #{tpu_custom_call.1} parent=11 // pred_check_branch
          %300 = sbr.rel (%p298) target = $region44
        $region43: #{tpu_custom_call.1} parent=11 // pred_region
          _
        $region44: #{tpu_custom_call.1} parent=11 // pred_fallthru
          _
        // Predicated region
        $region45: #{tpu_custom_call.1} parent=11 // pred_check
          %p301 = pneg %p236
        $region46: #{tpu_custom_call.1} parent=11 // pred_check_branch
          %303 = sbr.rel (%p301) target = $region48
        $region47: #{tpu_custom_call.1} parent=11 // pred_region
          _
        $region48: #{tpu_custom_call.1} parent=11 // pred_fallthru
          _
      $region12: #{tpu_custom_call.1} parent=5 // pred_fallthru
        _
      %p304 = scmp.lt.s32.totalorder %s21, 2
      // Predicated region
      $region49: #{tpu_custom_call.1} parent=5 // pred_check
        %p305 = pneg %p304
      $region50: #{tpu_custom_call.1} parent=5 // pred_check_branch
        %307 = sbr.rel (%p305) target = $region52
      $region51: #{tpu_custom_call.1} parent=5 // pred_region
        // Predicated region
        $region53: #{tpu_custom_call.1} parent=51 // pred_check
          %p308 = pneg %p41
        $region54: #{tpu_custom_call.1} parent=51 // pred_check_branch
          %310 = sbr.rel (%p308) target = $region56
        $region55: #{tpu_custom_call.1} parent=51 // pred_region
          %p311 = scmp.lt.s32.totalorder %s21, 1
          %s312 = scalar_select %p311, %s21, 1
          %s313 = smul.addr %s312, 2
          %s314 = scalar_lea.vmem %s0, %s313
        $region56: #{tpu_custom_call.1} parent=51 // pred_fallthru
          _
      $region52: #{tpu_custom_call.1} parent=5 // pred_fallthru
        _
      %p315 = scmp.le.s32.totalorder 1, %s21
      %p316 = scmp.lt.s32.totalorder %s21, 3
      %p317 = pnand %p315, %p316
      %p318 = pneg %p317
      // Predicated region
      $region57: #{tpu_custom_call.1} parent=5 // pred_check
        _
      $region58: #{tpu_custom_call.1} parent=5 // pred_check_branch
        %320 = sbr.rel (%p317) target = $region60
      $region59: #{tpu_custom_call.1} parent=5 // pred_region
        %s321 = ssub.s32 %s21, 1
        %p322 = scmp.lt.s32.totalorder %s26, 1
        %s323 = scalar_select %p322, %s26, 1
        %s324 = smul.addr %s323, 2
        %s325 = scalar_lea.vmem %s0, %s324
        %p326 = pneg %p47
        %p327 = pneg %p44
        %p328 = pneg %p68
        %p329 = pneg %p65
        %p330 = pneg %p89
        %p331 = pneg %p86
        %p332 = pneg %p110
        %p333 = pneg %p107
        %p334 = pneg %p131
        %p335 = pneg %p128
        %p336 = pneg %p152
        %p337 = pneg %p149
        %p338 = pneg %p173
        %p339 = pneg %p170
        %p340 = pneg %p194
        %p341 = pneg %p191
        %p342 = pneg %p215
        %p343 = pneg %p212
        %p344 = pneg %p236
        %p345 = pneg %p233
        %p346 = pneg %p262
        %p347 = pneg %p259
        %s348 = sand.u32 %s249, 1
        %s349 = scalar_lea.sflag [#allocation4], %s348
        %s350 = sand.u32 %s249, 1
        %s351 = scalar_lea.vmem [#allocation3], %s350
        %p352 = scmp.lt.s32.totalorder %s26, 1
        %s353 = scalar_select %p352, %s26, 1
        %s354 = smul.addr %s353, 2
        %s355 = scalar_lea.vmem %s0, %s354
        %v356 = vld [vmem:[%s355] sm:$0x1]
        %v357 = vld [vmem:[%s355 + $0x1] sm:$0x1]
        %v358 = vld [vmem:[%s1] sm:$0xff]
        %v359 = vld [vmem:[%s1 + $0x8] sm:$0xff]
        %v360 = vld [vmem:[%s1 + $0x10] sm:$0xff]
        %v361 = vld [vmem:[%s1 + $0x18] sm:$0xff]
        %363 = vset.pattern.permute.xlu0 0
        %364 = vperm.xlu0 %363, %v358
        %v365 = vpop.permute.xlu0 %364
        %368 = vset.pattern.permute.xlu0 0
        %369 = vperm.xlu0 %368, %v359
        %v370 = vpop.permute.xlu0 %369
        %373 = vset.pattern.permute.xlu0 0
        %374 = vperm.xlu0 %373, %v360
        %v375 = vpop.permute.xlu0 %374
        %378 = vset.pattern.permute.xlu0 0
        %379 = vperm.xlu0 %378, %v361
        %v380 = vpop.permute.xlu0 %379
        %v382 = vlaneseq
        %v383 = vshrl.u32 %v382, 7
        %v384 = vsub.s32 0, %v383
        %v385 = vrot.slane %v356, %v384
        %v386 = vmul.f32 %v365, %v385
        %v387 = vmul.f32 %v370, %v385
        %v388 = vmul.f32 %v375, %v385
        %v389 = vmul.f32 %v380, %v385
        %v390 = vld [vmem:[%s2] sm:$0xff]
        %v391 = vld [vmem:[%s2 + $0x8] sm:$0xff]
        %v392 = vld [vmem:[%s2 + $0x10] sm:$0xff]
        %v393 = vld [vmem:[%s2 + $0x18] sm:$0xff]
        %395 = vset.pattern.permute.xlu0 0
        %396 = vperm.xlu0 %395, %v390
        %v397 = vpop.permute.xlu0 %396
        %400 = vset.pattern.permute.xlu0 0
        %401 = vperm.xlu0 %400, %v391
        %v402 = vpop.permute.xlu0 %401
        %405 = vset.pattern.permute.xlu0 0
        %406 = vperm.xlu0 %405, %v392
        %v407 = vpop.permute.xlu0 %406
        %410 = vset.pattern.permute.xlu0 0
        %411 = vperm.xlu0 %410, %v393
        %v412 = vpop.permute.xlu0 %411
        %v414 = vlaneseq
        %v415 = vshrl.u32 %v414, 7
        %v416 = vsub.s32 0, %v415
        %v417 = vrot.slane %v357, %v416
        %v418 = vmul.f32 %v397, %v417
        %v419 = vmul.f32 %v402, %v417
        %v420 = vmul.f32 %v407, %v417
        %v421 = vmul.f32 %v412, %v417
        %v422 = vadd.f32 %v386, %v418
        %v423 = vadd.f32 %v387, %v419
        %v424 = vadd.f32 %v388, %v420
        %v425 = vadd.f32 %v389, %v421
        %v426 = vld [vmem:[%s3] sm:$0xff]
        %v427 = vld [vmem:[%s3 + $0x8] sm:$0xff]
        %v428 = vld [vmem:[%s3 + $0x10] sm:$0xff]
        %v429 = vld [vmem:[%s3 + $0x18] sm:$0xff]
        %431 = vset.pattern.permute.xlu0 0
        %432 = vperm.xlu0 %431, %v426
        %v433 = vpop.permute.xlu0 %432
        %436 = vset.pattern.permute.xlu0 0
        %437 = vperm.xlu0 %436, %v427
        %v438 = vpop.permute.xlu0 %437
        %441 = vset.pattern.permute.xlu0 0
        %442 = vperm.xlu0 %441, %v428
        %v443 = vpop.permute.xlu0 %442
        %446 = vset.pattern.permute.xlu0 0
        %447 = vperm.xlu0 %446, %v429
        %v448 = vpop.permute.xlu0 %447
        %v450 = vadd.f32 %v422, %v433
        %v451 = vadd.f32 %v423, %v438
        %v452 = vadd.f32 %v424, %v443
        %v453 = vadd.f32 %v425, %v448
        %v454 = vmul.f32 %v450, 2.0
        %v455 = vmul.f32 %v451, 2.0
        %v456 = vmul.f32 %v452, 2.0
        %v457 = vmul.f32 %v453, 2.0
        %v458 = vmul.f32 %v454, 1.442695
        %v459 = vpow.pop %v458
        %v460 = vmul.f32 %v455, 1.442695
        %v461 = vpow.pop %v460
        %v462 = vmul.f32 %v456, 1.442695
        %v463 = vpow.pop %v462
        %v464 = vmul.f32 %v457, 1.442695
        %v465 = vpow.pop %v464
        %v466 = vadd.f32 %v459, 1.0
        %v467 = vadd.f32 %v461, 1.0
        %v468 = vadd.f32 %v463, 1.0
        %v469 = vadd.f32 %v465, 1.0
        %v470 = vrcp.pop %v466
        %v471 = vmul.f32 2.0, %v470
        %v472 = vrcp.pop %v467
        %v473 = vmul.f32 2.0, %v472
        %v474 = vrcp.pop %v468
        %v475 = vmul.f32 2.0, %v474
        %v476 = vrcp.pop %v469
        %v477 = vmul.f32 2.0, %v476
        %v478 = vsub.f32 1.0, %v471
        %v479 = vsub.f32 1.0, %v473
        %v480 = vsub.f32 1.0, %v475
        %v481 = vsub.f32 1.0, %v477
        %v482 = vld [vmem:[%s4] sm:$0xff]
        %v483 = vld [vmem:[%s4 + $0x8] sm:$0xff]
        %v484 = vld [vmem:[%s4 + $0x10] sm:$0xff]
        %v485 = vld [vmem:[%s4 + $0x18] sm:$0xff]
        %v486 = vld [vmem:[%s5] sm:$0xff]
        %v487 = vld [vmem:[%s5 + $0x8] sm:$0xff]
        %v488 = vld [vmem:[%s5 + $0x10] sm:$0xff]
        %v489 = vld [vmem:[%s5 + $0x18] sm:$0xff]
        %491 = vset.pattern.permute.xlu0 0
        %492 = vperm.xlu0 %491, %v486
        %v493 = vpop.permute.xlu0 %492
        %496 = vset.pattern.permute.xlu0 0
        %497 = vperm.xlu0 %496, %v487
        %v498 = vpop.permute.xlu0 %497
        %501 = vset.pattern.permute.xlu0 0
        %502 = vperm.xlu0 %501, %v488
        %v503 = vpop.permute.xlu0 %502
        %506 = vset.pattern.permute.xlu0 0
        %507 = vperm.xlu0 %506, %v489
        %v508 = vpop.permute.xlu0 %507
        %vm510 = vcmask 261120
        %v512 = vsel %vm510, %v482, 0
        %v515 = vsel %vm510, %v483, 0
        %v518 = vsel %vm510, %v484, 0
        %v521 = vsel %vm510, %v485, 0
        %523 = vmatprep.subr.mxu0 0.0
        %524 = vmatpush1.msra.mxu0 %v478
        %525 = vmatprep.subr.mxu0 0.0
        %526 = vmatpush1.msra.mxu0 %v479
        %527 = vmatprep.subr.mxu0 0.0
        %528 = vmatpush1.msra.mxu0 %v480
        %529 = vmatprep.subr.mxu0 0.0
        %530 = vmatpush1.msra.mxu0 %v481
        %531 = vmatprep.subr.mxu0 0.0
        %532 = vmatpush1.msra.mxu0 0.0
        %533 = vmatprep.subr.mxu0 0.0
        %534 = vmatpush1.msra.mxu0 0.0
        %535 = vmatprep.subr.mxu0 0.0
        %536 = vmatpush1.msra.mxu0 0.0
        %537 = vmatprep.subr.mxu0 0.0
        %538 = vmatpush1.msra.mxu0 0.0
        %539 = vmatprep.subr.mxu0 0.0
        %540 = vmatpush1.msra.mxu0 0.0
        %541 = vmatprep.subr.mxu0 0.0
        %542 = vmatpush1.msra.mxu0 0.0
        %543 = vmatprep.subr.mxu0 0.0
        %544 = vmatpush1.msra.mxu0 0.0
        %545 = vmatprep.subr.mxu0 0.0
        %546 = vmatpush1.msra.mxu0 0.0
        %547 = vmatprep.subr.mxu0 0.0
        %548 = vmatpush1.msra.mxu0 0.0
        %549 = vmatprep.subr.mxu0 0.0
        %550 = vmatpush1.msra.mxu0 0.0
        %551 = vmatprep.subr.mxu0 0.0
        %552 = vmatpush1.msra.mxu0 0.0
        %553 = vmatprep.subr.mxu0 0.0
        %554 = vmatpush1.msra.mxu0 0.0
        %555 = vmatprep.subr.mxu0 0.0
        %556 = vmatpush1.msra.mxu0 0.0
        %557 = vmatprep.subr.mxu0 0.0
        %558 = vmatpush1.msra.mxu0 0.0
        %559 = vmatprep.subr.mxu0 0.0
        %560 = vmatpush1.msra.mxu0 0.0
        %561 = vmatprep.subr.mxu0 0.0
        %562 = vmatpush1.msra.mxu0 0.0
        %563 = vmatprep.subr.mxu0 0.0
        %564 = vmatpush1.msra.mxu0 0.0
        %565 = vmatprep.subr.mxu0 0.0
        %566 = vmatpush1.msra.mxu0 0.0
        %567 = vmatprep.subr.mxu0 0.0
        %568 = vmatpush1.msra.mxu0 0.0
        %569 = vmatprep.subr.mxu0 0.0
        %570 = vmatpush1.msra.mxu0 0.0
        %571 = vmatprep.subr.mxu0 0.0
        %572 = vmatpush1.msra.mxu0 0.0
        %573 = vmatprep.subr.mxu0 0.0
        %574 = vmatpush1.msra.mxu0 0.0
        %575 = vmatprep.subr.mxu0 0.0
        %576 = vmatpush1.msra.mxu0 0.0
        %577 = vmatprep.subr.mxu0 0.0
        %578 = vmatpush1.msra.mxu0 0.0
        %579 = vmatprep.subr.mxu0 0.0
        %580 = vmatpush1.msra.mxu0 0.0
        %581 = vmatprep.subr.mxu0 0.0
        %582 = vmatpush1.msra.mxu0 0.0
        %583 = vmatprep.subr.mxu0 0.0
        %584 = vmatpush1.msra.mxu0 0.0
        %585 = vmatprep.subr.mxu0 0.0
        %586 = vmatpush1.msra.mxu0 0.0
        %587 = vmatprep.mubr.f32.mxu0 0.0
        %588 = vmatmul.mubr.f32.gmra.mrb[0].mxu0 %v512
        %v589 = vpop.f32.mrb[0].mxu0
        %v590 = vadd.f32 %v493, %v589
        %v591 = vpop.f32.mrb[0].mxu0
        %592 = vmatprep.mubr.f32.mxu0 0.0
        %593 = vmatmul.mubr.f32.gmra.mrb[0].mxu0 %v515
        %v594 = vpop.f32.mrb[0].mxu0
        %v595 = vadd.f32 %v498, %v594
        %v596 = vpop.f32.mrb[0].mxu0
        %597 = vmatprep.mubr.f32.mxu0 0.0
        %598 = vmatmul.mubr.f32.gmra.mrb[0].mxu0 %v518
        %v599 = vpop.f32.mrb[0].mxu0
        %v600 = vadd.f32 %v503, %v599
        %v601 = vpop.f32.mrb[0].mxu0
        %602 = vmatprep.mubr.f32.mxu0 0.0
        %603 = vmatmul.mubr.f32.gmra.mrb[0].mxu0 %v521
        %v604 = vpop.f32.mrb[0].mxu0
        %v605 = vadd.f32 %v508, %v604
        %v606 = vpop.f32.mrb[0].mxu0
        %607 = vdwg.mxu0
        %v608 = vmul.f32 %v590, 2.0
        %v609 = vmul.f32 %v595, 2.0
        %v610 = vmul.f32 %v600, 2.0
        %v611 = vmul.f32 %v605, 2.0
        %v612 = vmul.f32 %v608, 1.442695
        %v613 = vpow.pop %v612
        %v614 = vmul.f32 %v609, 1.442695
        %v615 = vpow.pop %v614
        %v616 = vmul.f32 %v610, 1.442695
        %v617 = vpow.pop %v616
        %v618 = vmul.f32 %v611, 1.442695
        %v619 = vpow.pop %v618
        %v620 = vadd.f32 %v613, 1.0
        %v621 = vadd.f32 %v615, 1.0
        %v622 = vadd.f32 %v617, 1.0
        %v623 = vadd.f32 %v619, 1.0
        %v624 = vrcp.pop %v620
        %v625 = vmul.f32 2.0, %v624
        %v626 = vrcp.pop %v621
        %v627 = vmul.f32 2.0, %v626
        %v628 = vrcp.pop %v622
        %v629 = vmul.f32 2.0, %v628
        %v630 = vrcp.pop %v623
        %v631 = vmul.f32 2.0, %v630
        %v632 = vsub.f32 1.0, %v625
        %v633 = vsub.f32 1.0, %v627
        %v634 = vsub.f32 1.0, %v629
        %v635 = vsub.f32 1.0, %v631
        %v636 = vld [vmem:[%s6] sm:$0xff]
        %v637 = vld [vmem:[%s6 + $0x8] sm:$0xff]
        %v638 = vld [vmem:[%s6 + $0x10] sm:$0xff]
        %v639 = vld [vmem:[%s6 + $0x18] sm:$0xff]
        %v640 = vld [vmem:[%s7] sm:$0xff]
        %v641 = vld [vmem:[%s7 + $0x8] sm:$0xff]
        %v642 = vld [vmem:[%s7 + $0x10] sm:$0xff]
        %v643 = vld [vmem:[%s7 + $0x18] sm:$0xff]
        %645 = vset.pattern.permute.xlu0 0
        %646 = vperm.xlu0 %645, %v640
        %v647 = vpop.permute.xlu0 %646
        %650 = vset.pattern.permute.xlu0 0
        %651 = vperm.xlu0 %650, %v641
        %v652 = vpop.permute.xlu0 %651
        %655 = vset.pattern.permute.xlu0 0
        %656 = vperm.xlu0 %655, %v642
        %v657 = vpop.permute.xlu0 %656
        %660 = vset.pattern.permute.xlu0 0
        %661 = vperm.xlu0 %660, %v643
        %v662 = vpop.permute.xlu0 %661
        %v665 = vsel %vm510, %v636, 0
        %v668 = vsel %vm510, %v637, 0
        %v671 = vsel %vm510, %v638, 0
        %v674 = vsel %vm510, %v639, 0
        %676 = vmatprep.subr.mxu0 0.0
        %677 = vmatpush1.msra.mxu0 %v632
        %678 = vmatprep.subr.mxu0 0.0
        %679 = vmatpush1.msra.mxu0 %v633
        %680 = vmatprep.subr.mxu0 0.0
        %681 = vmatpush1.msra.mxu0 %v634
        %682 = vmatprep.subr.mxu0 0.0
        %683 = vmatpush1.msra.mxu0 %v635
        %684 = vmatprep.subr.mxu0 0.0
        %685 = vmatpush1.msra.mxu0 0.0
        %686 = vmatprep.subr.mxu0 0.0
        %687 = vmatpush1.msra.mxu0 0.0
        %688 = vmatprep.subr.mxu0 0.0
        %689 = vmatpush1.msra.mxu0 0.0
        %690 = vmatprep.subr.mxu0 0.0
        %691 = vmatpush1.msra.mxu0 0.0
        %692 = vmatprep.subr.mxu0 0.0
        %693 = vmatpush1.msra.mxu0 0.0
        %694 = vmatprep.subr.mxu0 0.0
        %695 = vmatpush1.msra.mxu0 0.0
        %696 = vmatprep.subr.mxu0 0.0
        %697 = vmatpush1.msra.mxu0 0.0
        %698 = vmatprep.subr.mxu0 0.0
        %699 = vmatpush1.msra.mxu0 0.0
        %700 = vmatprep.subr.mxu0 0.0
        %701 = vmatpush1.msra.mxu0 0.0
        %702 = vmatprep.subr.mxu0 0.0
        %703 = vmatpush1.msra.mxu0 0.0
        %704 = vmatprep.subr.mxu0 0.0
        %705 = vmatpush1.msra.mxu0 0.0
        %706 = vmatprep.subr.mxu0 0.0
        %707 = vmatpush1.msra.mxu0 0.0
        %708 = vmatprep.subr.mxu0 0.0
        %709 = vmatpush1.msra.mxu0 0.0
        %710 = vmatprep.subr.mxu0 0.0
        %711 = vmatpush1.msra.mxu0 0.0
        %712 = vmatprep.subr.mxu0 0.0
        %713 = vmatpush1.msra.mxu0 0.0
        %714 = vmatprep.subr.mxu0 0.0
        %715 = vmatpush1.msra.mxu0 0.0
        %716 = vmatprep.subr.mxu0 0.0
        %717 = vmatpush1.msra.mxu0 0.0
        %718 = vmatprep.subr.mxu0 0.0
        %719 = vmatpush1.msra.mxu0 0.0
        %720 = vmatprep.subr.mxu0 0.0
        %721 = vmatpush1.msra.mxu0 0.0
        %722 = vmatprep.subr.mxu0 0.0
        %723 = vmatpush1.msra.mxu0 0.0
        %724 = vmatprep.subr.mxu0 0.0
        %725 = vmatpush1.msra.mxu0 0.0
        %726 = vmatprep.subr.mxu0 0.0
        %727 = vmatpush1.msra.mxu0 0.0
        %728 = vmatprep.subr.mxu0 0.0
        %729 = vmatpush1.msra.mxu0 0.0
        %730 = vmatprep.subr.mxu0 0.0
        %731 = vmatpush1.msra.mxu0 0.0
        %732 = vmatprep.subr.mxu0 0.0
        %733 = vmatpush1.msra.mxu0 0.0
        %734 = vmatprep.subr.mxu0 0.0
        %735 = vmatpush1.msra.mxu0 0.0
        %736 = vmatprep.subr.mxu0 0.0
        %737 = vmatpush1.msra.mxu0 0.0
        %738 = vmatprep.subr.mxu0 0.0
        %739 = vmatpush1.msra.mxu0 0.0
        %740 = vmatprep.mubr.f32.mxu0 0.0
        %741 = vmatmul.mubr.f32.gmra.mrb[0].mxu0 %v665
        %v742 = vpop.f32.mrb[0].mxu0
        %v743 = vadd.f32 %v647, %v742
        %v744 = vpop.f32.mrb[0].mxu0
        %745 = vmatprep.mubr.f32.mxu0 0.0
        %746 = vmatmul.mubr.f32.gmra.mrb[0].mxu0 %v668
        %v747 = vpop.f32.mrb[0].mxu0
        %v748 = vadd.f32 %v652, %v747
        %v749 = vpop.f32.mrb[0].mxu0
        %750 = vmatprep.mubr.f32.mxu0 0.0
        %751 = vmatmul.mubr.f32.gmra.mrb[0].mxu0 %v671
        %v752 = vpop.f32.mrb[0].mxu0
        %v753 = vadd.f32 %v657, %v752
        %v754 = vpop.f32.mrb[0].mxu0
        %755 = vmatprep.mubr.f32.mxu0 0.0
        %756 = vmatmul.mubr.f32.gmra.mrb[0].mxu0 %v674
        %v757 = vpop.f32.mrb[0].mxu0
        %v758 = vadd.f32 %v662, %v757
        %v759 = vpop.f32.mrb[0].mxu0
        %760 = vdwg.mxu0
        %v761 = vmul.f32 %v743, 2.0
        %v762 = vmul.f32 %v748, 2.0
        %v763 = vmul.f32 %v753, 2.0
        %v764 = vmul.f32 %v758, 2.0
        %v765 = vmul.f32 %v761, 1.442695
        %v766 = vpow.pop %v765
        %v767 = vmul.f32 %v762, 1.442695
        %v768 = vpow.pop %v767
        %v769 = vmul.f32 %v763, 1.442695
        %v770 = vpow.pop %v769
        %v771 = vmul.f32 %v764, 1.442695
        %v772 = vpow.pop %v771
        %v773 = vadd.f32 %v766, 1.0
        %v774 = vadd.f32 %v768, 1.0
        %v775 = vadd.f32 %v770, 1.0
        %v776 = vadd.f32 %v772, 1.0
        %v777 = vrcp.pop %v773
        %v778 = vmul.f32 2.0, %v777
        %v779 = vrcp.pop %v774
        %v780 = vmul.f32 2.0, %v779
        %v781 = vrcp.pop %v775
        %v782 = vmul.f32 2.0, %v781
        %v783 = vrcp.pop %v776
        %v784 = vmul.f32 2.0, %v783
        %v785 = vsub.f32 1.0, %v778
        %v786 = vsub.f32 1.0, %v780
        %v787 = vsub.f32 1.0, %v782
        %v788 = vsub.f32 1.0, %v784
        %v789 = vld [vmem:[%s8] sm:$0xff]
        %v790 = vld [vmem:[%s8 + $0x8] sm:$0xff]
        %v791 = vld [vmem:[%s8 + $0x10] sm:$0xff]
        %v792 = vld [vmem:[%s8 + $0x18] sm:$0xff]
        %v793 = vld [vmem:[#allocation2] sm:$0x1]
        %795 = vset.pattern.permute.xlu0 0
        %796 = vperm.xlu0 %795, %v789
        %v797 = vpop.permute.xlu0 %796
        %800 = vset.pattern.permute.xlu0 0
        %801 = vperm.xlu0 %800, %v790
        %v802 = vpop.permute.xlu0 %801
        %805 = vset.pattern.permute.xlu0 0
        %806 = vperm.xlu0 %805, %v791
        %v807 = vpop.permute.xlu0 %806
        %810 = vset.pattern.permute.xlu0 0
        %811 = vperm.xlu0 %810, %v792
        %v812 = vpop.permute.xlu0 %811
        %v814 = vmul.f32 %v797, %v785
        %v815 = vmul.f32 %v802, %v786
        %v816 = vmul.f32 %v807, %v787
        %v817 = vmul.f32 %v812, %v788
        %v818 = vadd.f32 %v814, %v815
        %v819 = vadd.f32 %v818, %v816
        %v820 = vadd.f32 %v819, %v817
        %v821 = vrot.slane %v820, 4
        %v822 = vadd.f32 %v820, %v821
        %v823 = vrot.slane %v822, 2
        %v824 = vadd.f32 %v822, %v823
        %v825 = vrot.slane %v824, 1
        %v826 = vadd.f32 %v824, %v825
        %828 = vset.pattern.permute.xlu0 0
        %829 = vperm.xlu0 %828, %v793
        %v830 = vpop.permute.xlu0 %829
        %v832 = vlaneseq
        %v833 = vshrl.u32 %v832, 7
        %v834 = vsub.s32 0, %v833
        %v835 = vrot.slane %v830, %v834
        %v836 = vadd.f32 %v826, %v835
        %837 = vst [vmem:[%s351] sm:$0x1] %v836
        %s838 = sand.u32 %s249, 1
        %s839 = scalar_lea.sflag [#allocation4], %s838
        %s840 = sand.u32 %s249, 1
        %s841 = scalar_lea.vmem [#allocation3], %s840
        // Predicated region
        $region61: #{tpu_custom_call.1} parent=59 // pred_check
          %p842 = pneg %p259
        $region62: #{tpu_custom_call.1} parent=59 // pred_check_branch
          %844 = sbr.rel (%p842) target = $region64
        $region63: #{tpu_custom_call.1} parent=59 // pred_region
          %s846 = ssub.s32 16, 16
          %847 = vsyncadd %s839, %s846
          %s848 = smul.addr %s26, 16
          %s849 = scalar_lea.hbm %s10, %s848
          %s851 = sshll.u32 %s841, 4
          %s852 = int_to_ptr.vmem [resolvable:$true] %s851
          %854 = dma.vmem_to_hbm [thread:$0]  %s852, 16, %s849, %s839
        $region64: #{tpu_custom_call.1} parent=59 // pred_fallthru
          _
      $region60: #{tpu_custom_call.1} parent=5 // pred_fallthru
        _
      %p855 = scmp.le.s32.totalorder 2, %s21
      // Predicated region
      $region65: #{tpu_custom_call.1} parent=5 // pred_check
        %p856 = pneg %p855
      $region66: #{tpu_custom_call.1} parent=5 // pred_check_branch
        %858 = sbr.rel (%p856) target = $region68
      $region67: #{tpu_custom_call.1} parent=5 // pred_region
        %s859 = ssub.s32 %s21, 2
        // Predicated region
        $region69: #{tpu_custom_call.1} parent=67 // pred_check
          %p860 = pneg %p265
        $region70: #{tpu_custom_call.1} parent=67 // pred_check_branch
          %862 = sbr.rel (%p860) target = $region72
        $region71: #{tpu_custom_call.1} parent=67 // pred_region
          %s863 = sand.u32 %s250, 1
          %s864 = scalar_lea.sflag [#allocation4], %s863
          %s865 = sand.u32 %s250, 1
          %s866 = scalar_lea.vmem [#allocation3], %s865
          %867 = dma.done %s864, 16
        $region72: #{tpu_custom_call.1} parent=67 // pred_fallthru
          _
      $region68: #{tpu_custom_call.1} parent=5 // pred_fallthru
        _
    $region6: #{tpu_custom_call.1} parent=1 // loop_footer
      %s25 = sadd.s32 1, %s21
    $region7: #{tpu_custom_call.1} parent=1 // loop_footer_branch
      %20 = sbr.rel target = $region3
    $region8: #{tpu_custom_call.1} parent=1 // loop_exit
      _
    %868 = vsyncpa [#allocation4], 1
    %s869 = scalar_lea.sflag [#allocation4], 1
    %870 = vsyncpa %s869, 1

</llo_original>
